<compile_context>
chip_gen: v7x
topology: tpu7x:2x2x1
jax: 0.10.0
libtpu: 0.0.40
codegen_flags: <defaults>
</compile_context>

<pallas_src>
import jax
import jax.numpy as jnp
from jax.experimental import pallas as pl
from jax.experimental.pallas import tpu as pltpu

_LANE = 128


def _round_up(n, m):
    return ((n + m - 1) // m) * m


def _num_tensorcores():
    """Grid-step parallelism target: 2 on dual-TensorCore chips, else 1."""
    try:
        kind = jax.devices()[0].device_kind.lower()
    except Exception:
        return 1
    # v7x (2 TC/chip) and the megacore parts (v4, v5p) benefit from an even
    # split across "parallel" grid steps; v5e/v6e are single-TC.
    return 2 if ("v7" in kind or "v4" in kind or "v5p" in kind) else 1


def _choose_tile(batch, n_cores, max_tb):
    """Lane-aligned batch tile: fewest, fattest steps; even multiple of n_cores."""
    b_lane = _round_up(max(batch, 1), _LANE)
    steps = max(n_cores, pl.cdiv(b_lane, max_tb))
    if n_cores > 1 and steps % n_cores:
        steps = _round_up(steps, n_cores)        # balanced split across TCs
    return min(_round_up(pl.cdiv(b_lane, steps), _LANE), max_tb)


def mlp_kernel(xT_ref, w1_ref, w2_ref, b2_ref, w3_ref, b3_ref, o_ref):
    # xT_ref: (D+1, TB) bf16 -- batch on the lane (last) axis; last row is
    # ones, so the fc1 bias rides inside the matmul.
    xT = xT_ref[...]

    # fc1 + ReLU : (H1, D+1) @ (D+1, TB) -> (H1, TB), f32 accumulation.
    h1 = jnp.dot(w1_ref[...], xT, preferred_element_type=jnp.float32)
    h1 = jnp.maximum(h1, 0.0).astype(w2_ref.dtype)          # bf16 for the MXU

    # fc2 + ReLU : (H2, H1) @ (H1, TB) -> (H2, TB); bias column broadcasts
    # over lanes.
    h2 = jnp.dot(w2_ref[...], h1, preferred_element_type=jnp.float32)
    h2 = jnp.maximum(h2 + b2_ref[...], 0.0)

    # fc3: VPU broadcast-multiply + sublane (XLU) reduction -- no 1-wide MXU
    # matmul.  b3 arrives as an SMEM scalar.
    z = jnp.sum(h2 * w3_ref[...], axis=0, keepdims=True) + b3_ref[0]   # (1, TB)

    # Sigmoid via a single EUP tanh: sigmoid(z) = 0.5*tanh(0.5*z) + 0.5
    # (exact identity; the two VPU mul/adds are filler in idle VALU slots).
    o_ref[...] = (0.5 * jnp.tanh(0.5 * z) + 0.5).astype(o_ref.dtype)


def mlp_forward(x, params, *, max_tile_b=32768):
    """x: (B, 5) float32.  params: PyTorch-layout weights (see init_params)."""
    B, D = x.shape
    w1, b1 = params["w1"], params["b1"]     # (H1, D), (H1, 1)
    w2, b2 = params["w2"], params["b2"]     # (H2, H1), (H2, 1)
    w3, b3 = params["w3"], params["b3"]     # (H2, 1), (1,)

    n_cores = _num_tensorcores()
    tb = _choose_tile(B, n_cores, max_tile_b)
    B_pad = _round_up(B, tb)

    # Layout plumbing: batch on the lane axis, fc1 bias folded in via a
    # ones-column, ragged batch padded to a multiple of tb.  bf16 x halves the
    # only meaningful HBM stream the kernel reads.
    # NOTE: for very large B, produce x in (D, B) layout upstream (or keep a
    # persistent transposed buffer) so this pad+transpose is not a standalone
    # HBM->HBM copy that rivals the kernel's own traffic.
    x_aug = jnp.concatenate([x, jnp.ones((B, 1), x.dtype)], axis=1)   # (B, D+1)
    if B_pad != B:
        x_aug = jnp.pad(x_aug, ((0, B_pad - B), (0, 0)))
    xT = x_aug.T.astype(jnp.bfloat16)                                  # (D+1, B_pad)

    w1a = jnp.concatenate([w1, b1], axis=1).astype(jnp.bfloat16)       # (H1, D+1)
    w2b = w2.astype(jnp.bfloat16)                                      # (H2, H1)

    grid = (B_pad // tb,)
    rep = lambda shape: pl.BlockSpec(shape, lambda i: (0, 0))  # resident block

    out = pl.pallas_call(
        mlp_kernel,
        out_shape=jax.ShapeDtypeStruct((1, B_pad), jnp.float32),
        grid=grid,
        in_specs=[
            pl.BlockSpec((D + 1, tb), lambda i: (0, i)),         # x^T, lane-tiled
            rep(w1a.shape),                                      # (H1, D+1) bf16
            rep(w2b.shape),                                      # (H2, H1)  bf16
            rep(b2.shape),                                       # (H2, 1)   f32
            rep(w3.shape),                                       # (H2, 1)   f32
            pl.BlockSpec(memory_space=pltpu.MemorySpace.SMEM),   # b3 scalar
        ],
        out_specs=pl.BlockSpec((1, tb), lambda i: (0, i)),       # lane-dense out
        compiler_params=pltpu.CompilerParams(
            dimension_semantics=("parallel",)),
    )(xT, w1a, w2b, b2, w3, b3)

    return out[0, :B].reshape(B, 1)


def kaiming_uniform(key, fan_in, shape):
    # PyTorch kaiming_uniform_(mode='fan_in', nonlinearity='relu'):
    # bound = sqrt(2) * sqrt(3 / fan_in) = sqrt(6 / fan_in)
    bound = jnp.sqrt(6.0 / fan_in)
    return jax.random.uniform(key, shape, jnp.float32, -bound, bound)


def bias_uniform(key, fan_in, shape):
    # PyTorch nn.Linear default bias init: U(-1/sqrt(fan_in), 1/sqrt(fan_in))
    bound = 1.0 / jnp.sqrt(float(fan_in))
    return jax.random.uniform(key, shape, jnp.float32, -bound, bound)


def init_params(key, hidden_size1, hidden_size2):
    ks = jax.random.split(key, 6)
    # Weights in PyTorch (out_features, in_features) layout; biases as columns
    # so they broadcast over the lane (batch) axis inside the kernel.
    w1 = kaiming_uniform(ks[0], 5, (hidden_size1, 5))
    b1 = bias_uniform(ks[1], 5, (hidden_size1, 1))
    w2 = kaiming_uniform(ks[2], hidden_size1, (hidden_size2, hidden_size1))
    b2 = bias_uniform(ks[3], hidden_size1, (hidden_size2, 1))
    w3 = kaiming_uniform(ks[4], hidden_size2, (hidden_size2, 1))   # fc3.weight^T
    b3 = bias_uniform(ks[5], hidden_size2, (1,))
    return dict(w1=w1, b1=b1, w2=w2, b2=b2, w3=w3, b3=b3)


def mlp_reference(x, p):
    h1 = jnp.maximum(x @ p["w1"].T + p["b1"][:, 0], 0.0)
    h2 = jnp.maximum(h1 @ p["w2"].T + p["b2"][:, 0], 0.0)
    return jax.nn.sigmoid(h2 @ p["w3"] + p["b3"])


if __name__ == "__main__":
    key = jax.random.PRNGKey(0)
    k_param, k_x = jax.random.split(key)

    hidden_size1, hidden_size2 = 32, 32
    batch = 257   # deliberately ragged: exercises wrapper padding / tile choice

    params = init_params(k_param, hidden_size1, hidden_size2)
    x = jax.random.normal(k_x, (batch, 5), jnp.float32)

    out = mlp_forward(x, params)
    out = jax.block_until_ready(out)

    ref = mlp_reference(x, params)
    assert out.shape == (batch, 1)
    # The two matmuls use native bf16 MXU inputs with f32 accumulation; at
    # these widths (K = 6 / 32) that bounds the sigmoid-output error to a few
    # 1e-3, so a 1e-2 tolerance on values in [0, 1] is comfortably safe.
    assert jnp.allclose(out, ref, atol=1e-2, rtol=1e-2), "mismatch vs reference"

    print("KERNEL_OK")
</pallas_src>

<mosaic_0001>
module attributes {stable_mosaic.version = 11 : i64} {
  func.func @mlp_kernel(%arg0: i32, %arg1: memref<6x384xbf16, #tpu.memory_space<vmem>>, %arg2: memref<32x6xbf16, #tpu.memory_space<vmem>>, %arg3: memref<32x32xbf16, #tpu.memory_space<vmem>>, %arg4: memref<32x1xf32, #tpu.memory_space<vmem>>, %arg5: memref<32x1xf32, #tpu.memory_space<vmem>>, %arg6: memref<1xf32, #tpu.memory_space<smem>>, %arg7: memref<1x384xf32, #tpu.memory_space<vmem>>) attributes {dimension_semantics = [#tpu.dimension_semantics<parallel>], iteration_bounds = array<i64: 1>, scalar_prefetch = 0 : i64, scratch_operands = 0 : i64, tpu.core_type = #tpu.core_type<tc>, window_params = [{transform_indices = @transform_0, window_bounds = array<i64: 6, 384>}, {pipeline_mode = #tpu.pipeline_mode<synchronous>, transform_indices = @transform_1, window_bounds = array<i64: 32, 6>}, {pipeline_mode = #tpu.pipeline_mode<synchronous>, transform_indices = @transform_2, window_bounds = array<i64: 32, 32>}, {pipeline_mode = #tpu.pipeline_mode<synchronous>, transform_indices = @transform_3, window_bounds = array<i64: 32, 1>}, {pipeline_mode = #tpu.pipeline_mode<synchronous>, transform_indices = @transform_4, window_bounds = array<i64: 32, 1>}, {transform_indices = @transform_5, window_bounds = array<i64: 1>}, {transform_indices = @transform_6, window_bounds = array<i64: 1, 384>}]} {
    %c0 = arith.constant 0 : index
    %c0_0 = arith.constant 0 : index
    %0 = vector.load %arg1[%c0, %c0_0] : memref<6x384xbf16, #tpu.memory_space<vmem>>, vector<6x384xbf16>
    %c0_1 = arith.constant 0 : index
    %c0_2 = arith.constant 0 : index
    %1 = vector.load %arg2[%c0_1, %c0_2] : memref<32x6xbf16, #tpu.memory_space<vmem>>, vector<32x6xbf16>
    %cst = arith.constant dense<0.000000e+00> : vector<32x384xf32>
    %2 = tpu.matmul %1, %0, %cst {dimension_numbers = #tpu.dot_dimension_numbers<[1], [0], [0], [1], [0, 0, 1, 1], [], []>} : vector<32x6xbf16>, vector<6x384xbf16>, vector<32x384xf32> -> vector<32x384xf32>
    %cst_3 = arith.constant 0.000000e+00 : f32
    %3 = vector.broadcast %cst_3 : f32 to vector<32x384xf32>
    %4 = arith.maximumf %2, %3 : vector<32x384xf32>
    %5 = arith.truncf %4 : vector<32x384xf32> to vector<32x384xbf16>
    %c0_4 = arith.constant 0 : index
    %c0_5 = arith.constant 0 : index
    %6 = vector.load %arg3[%c0_4, %c0_5] : memref<32x32xbf16, #tpu.memory_space<vmem>>, vector<32x32xbf16>
    %cst_6 = arith.constant dense<0.000000e+00> : vector<32x384xf32>
    %7 = tpu.matmul %6, %5, %cst_6 {dimension_numbers = #tpu.dot_dimension_numbers<[1], [0], [0], [1], [0, 0, 1, 1], [], []>} : vector<32x32xbf16>, vector<32x384xbf16>, vector<32x384xf32> -> vector<32x384xf32>
    %c0_7 = arith.constant 0 : index
    %c0_8 = arith.constant 0 : index
    %8 = vector.load %arg4[%c0_7, %c0_8] : memref<32x1xf32, #tpu.memory_space<vmem>>, vector<32x1xf32>
    %9 = vector.broadcast %8 : vector<32x1xf32> to vector<32x384xf32>
    %10 = arith.addf %7, %9 : vector<32x384xf32>
    %cst_9 = arith.constant 0.000000e+00 : f32
    %11 = vector.broadcast %cst_9 : f32 to vector<32x384xf32>
    %12 = arith.maximumf %10, %11 : vector<32x384xf32>
    %c0_10 = arith.constant 0 : index
    %c0_11 = arith.constant 0 : index
    %13 = vector.load %arg5[%c0_10, %c0_11] : memref<32x1xf32, #tpu.memory_space<vmem>>, vector<32x1xf32>
    %14 = vector.broadcast %13 : vector<32x1xf32> to vector<32x384xf32>
    %15 = arith.mulf %12, %14 : vector<32x384xf32>
    %cst_12 = arith.constant dense<0.000000e+00> : vector<384xf32>
    %16 = vector.multi_reduction <add>, %15, %cst_12 [0] : vector<32x384xf32> to vector<384xf32>
    %17 = vector.shape_cast %16 : vector<384xf32> to vector<1x384xf32>
    %c0_13 = arith.constant 0 : index
    %18 = memref.load %arg6[%c0_13] : memref<1xf32, #tpu.memory_space<smem>>
    %19 = vector.broadcast %18 : f32 to vector<1x384xf32>
    %20 = arith.addf %17, %19 : vector<1x384xf32>
    %cst_14 = arith.constant 5.000000e-01 : f32
    %21 = vector.broadcast %cst_14 : f32 to vector<1x384xf32>
    %22 = arith.mulf %21, %20 : vector<1x384xf32>
    %23 = math.tanh %22 : vector<1x384xf32>
    %cst_15 = arith.constant 5.000000e-01 : f32
    %24 = vector.broadcast %cst_15 : f32 to vector<1x384xf32>
    %25 = arith.mulf %24, %23 : vector<1x384xf32>
    %cst_16 = arith.constant 5.000000e-01 : f32
    %26 = vector.broadcast %cst_16 : f32 to vector<1x384xf32>
    %27 = arith.addf %25, %26 : vector<1x384xf32>
    %c0_17 = arith.constant 0 : index
    %c0_18 = arith.constant 0 : index
    %28 = vector.load %arg7[%c0_17, %c0_18] : memref<1x384xf32, #tpu.memory_space<vmem>>, vector<1x384xf32>
    tpu.vector_store %arg7[%c0_17, %c0_18], %27 {strides = array<i32>} : memref<1x384xf32, #tpu.memory_space<vmem>>, vector<1x384xf32>,
    return
  }
  func.func @transform_0(%arg0: i32) -> (i32, i32) {
    %c0_i32 = arith.constant 0 : i32
    %c0_i32_0 = arith.constant 0 : i32
    return %c0_i32, %arg0 : i32, i32
  }
  func.func @transform_1(%arg0: i32) -> (i32, i32) {
    %c0_i32 = arith.constant 0 : i32
    %c0_i32_0 = arith.constant 0 : i32
    %c0_i32_1 = arith.constant 0 : i32
    return %c0_i32, %c0_i32_0 : i32, i32
  }
  func.func @transform_2(%arg0: i32) -> (i32, i32) {
    %c0_i32 = arith.constant 0 : i32
    %c0_i32_0 = arith.constant 0 : i32
    %c0_i32_1 = arith.constant 0 : i32
    return %c0_i32, %c0_i32_0 : i32, i32
  }
  func.func @transform_3(%arg0: i32) -> (i32, i32) {
    %c0_i32 = arith.constant 0 : i32
    %c0_i32_0 = arith.constant 0 : i32
    %c0_i32_1 = arith.constant 0 : i32
    return %c0_i32, %c0_i32_0 : i32, i32
  }
  func.func @transform_4(%arg0: i32) -> (i32, i32) {
    %c0_i32 = arith.constant 0 : i32
    %c0_i32_0 = arith.constant 0 : i32
    %c0_i32_1 = arith.constant 0 : i32
    return %c0_i32, %c0_i32_0 : i32, i32
  }
  func.func @transform_5(%arg0: i32) -> i32 {
    %c0_i32 = arith.constant 0 : i32
    %c0_i32_0 = arith.constant 0 : i32
    return %c0_i32 : i32
  }
  func.func @transform_6(%arg0: i32) -> (i32, i32) {
    %c0_i32 = arith.constant 0 : i32
    %c0_i32_0 = arith.constant 0 : i32
    return %c0_i32, %arg0 : i32, i32
  }
}

</mosaic_0001>

<llo_original>
// kernel: tpu_custom_call.1
$region0: #{tpu_custom_call.1}
  #allocation0 [shape = 'u32[]', space=smem, size = 0x4, offset = 0x4, fixed_abs, tag = 'smem constant byte address 0x4 - core index']
  #allocation1 [shape = 'u32[144,128]{1,0:T(1,128)}', space=vmem, size = 0x12000, scoped, tag = 'internal scratch']
  #allocation2 [shape = 'f32[1]{0:T(128)S(6)}', space=smem, size = 0x200, scoped, tag = 'scoped memory for tpu_custom_call.1']
  %s0 = inlined_call_operand.vmem [shape: bf16[6,384], index: 0, kind: input, shape index: {}]
  %s1 = inlined_call_operand.vmem [shape: bf16[32,6], index: 1, kind: input, shape index: {}]
  %s2 = inlined_call_operand.vmem [shape: bf16[32,32], index: 2, kind: input, shape index: {}]
  %s3 = inlined_call_operand.vmem [shape: f32[32,1], index: 3, kind: input, shape index: {}]
  %s4 = inlined_call_operand.vmem [shape: f32[32,1], index: 4, kind: input, shape index: {}]
  %s5 = inlined_call_operand.<no memory space> [shape: f32[1], index: 5, kind: input, shape index: {}]
  %s6 = inlined_call_operand.hbm [shape: f32[1,384], index: 6, kind: output, shape index: {}]
  %s7 = sld [smem:[#allocation0]]
  $region34: #{tpu_custom_call.1} parent=0
    _
  %s9 = ssub.s32 1, %s7
  %s10 = scalar_select 0, %s9, %s7
  %11 = sst [smem:[#allocation2]] %s5
  $region1: #{tpu_custom_call.1} parent=0
    #allocation3 [shape = 'u8[1536]{0}', space=vmem, size = 0x800, scoped, tag = 'output window, operand 0, single buffered']
    #allocation4 [shape = 's32[1]{0}', space=sflag, size = 0x4, scoped, tag = 'scoped memory for tpu_custom_call.1']
    %12 = vsyncpa [#allocation4], 0
    // Predicated region
    $region2: #{tpu_custom_call.1} parent=1 // pred_check
      _
    $region3: #{tpu_custom_call.1} parent=1 // pred_check_branch
      %14 = sbr.rel (0) target = $region5
    $region4: #{tpu_custom_call.1} parent=1 // pred_region
      _
    $region5: #{tpu_custom_call.1} parent=1 // pred_fallthru
      _
    // Predicated region
    $region6: #{tpu_custom_call.1} parent=1 // pred_check
      _
    $region7: #{tpu_custom_call.1} parent=1 // pred_check_branch
      %16 = sbr.rel (0) target = $region9
    $region8: #{tpu_custom_call.1} parent=1 // pred_region
      _
    $region9: #{tpu_custom_call.1} parent=1 // pred_fallthru
      _
    // Predicated region
    $region10: #{tpu_custom_call.1} parent=1 // pred_check
      _
    $region11: #{tpu_custom_call.1} parent=1 // pred_check_branch
      %18 = sbr.rel (0) target = $region13
    $region12: #{tpu_custom_call.1} parent=1 // pred_region
      _
    $region13: #{tpu_custom_call.1} parent=1 // pred_fallthru
      _
    // Predicated region
    $region14: #{tpu_custom_call.1} parent=1 // pred_check
      _
    $region15: #{tpu_custom_call.1} parent=1 // pred_check_branch
      %20 = sbr.rel (0) target = $region17
    $region16: #{tpu_custom_call.1} parent=1 // pred_region
      _
    $region17: #{tpu_custom_call.1} parent=1 // pred_fallthru
      _
    // Predicated region
    $region18: #{tpu_custom_call.1} parent=1 // pred_check
      _
    $region19: #{tpu_custom_call.1} parent=1 // pred_check_branch
      %22 = sbr.rel (0) target = $region21
    $region20: #{tpu_custom_call.1} parent=1 // pred_region
      _
    $region21: #{tpu_custom_call.1} parent=1 // pred_fallthru
      _
    // Predicated region
    $region22: #{tpu_custom_call.1} parent=1 // pred_check
      _
    $region23: #{tpu_custom_call.1} parent=1 // pred_check_branch
      %24 = sbr.rel (0) target = $region25
    $region24: #{tpu_custom_call.1} parent=1 // pred_region
      _
    $region25: #{tpu_custom_call.1} parent=1 // pred_fallthru
      _
    %v26 = vld [vmem:[%s0] sm:$0x77]
    %v27 = vld [vmem:[%s0 + $0x8] sm:$0x7]
    %v28 = vld [vmem:[%s1] sm:$0xf]
    %v29 = vld [vmem:[%s1 + $0x4] sm:$0xf]
    %v30 = vld [vmem:[%s1 + $0x8] sm:$0xf]
    %v31 = vld [vmem:[%s1 + $0xc] sm:$0xf]
    %v36 = vunpack.c.l.b16 %v28
    %v37 = vunpack.c.l.b16 %v29
    %v38 = vunpack.c.l.b16 %v30
    %v39 = vunpack.c.l.b16 %v31
    %v40 = vpack.c.b16 %v37, %v36
    %v41 = vpack.c.b16 %v39, %v38
    %v44 = vunpack.c.l.b16 %v26
    %v45 = vunpack.c.h.b16 %v26
    %v46 = vunpack.c.l.b16 %v27
    %v47 = vpack.c.b16 %v44, %v44
    %v48 = vpack.c.b16 %v45, %v45
    %v49 = vpack.c.b16 %v46, %v46
    %vm50 = vcmask 48128
    %v52 = vsel %vm50, %v40, 0
    %v55 = vsel %vm50, %v41, 0
    %vm57 = vcmask 1042432
    %v59 = vsel %vm57, %v47, 0
    %v62 = vsel %vm57, %v48, 0
    %v65 = vsel %vm57, %v49, 0
    %67 = vmatprep.subr.bf16.mxu0 %v62
    %68 = vmatpush1.bf16.msra.mxu0 %v59
    %69 = vmatprep.subr.bf16.mxu0 0
    %70 = vmatpush1.bf16.msra.mxu0 0
    %71 = vmatprep.subr.bf16.mxu0 0
    %72 = vmatpush1.bf16.msra.mxu0 0
    %73 = vmatprep.subr.bf16.mxu0 0
    %74 = vmatpush1.bf16.msra.mxu0 0
    %75 = vmatprep.subr.bf16.mxu0 0
    %76 = vmatpush1.bf16.msra.mxu0 0
    %77 = vmatprep.subr.bf16.mxu0 0
    %78 = vmatpush1.bf16.msra.mxu0 0
    %79 = vmatprep.subr.bf16.mxu0 0
    %80 = vmatpush1.bf16.msra.mxu0 0
    %81 = vmatprep.subr.bf16.mxu0 0
    %82 = vmatpush1.bf16.msra.mxu0 0
    %83 = vmatprep.subr.bf16.mxu0 0
    %84 = vmatpush1.bf16.msra.mxu0 0
    %85 = vmatprep.subr.bf16.mxu0 0
    %86 = vmatpush1.bf16.msra.mxu0 0
    %87 = vmatprep.subr.bf16.mxu0 0
    %88 = vmatpush1.bf16.msra.mxu0 0
    %89 = vmatprep.subr.bf16.mxu0 0
    %90 = vmatpush1.bf16.msra.mxu0 0
    %91 = vmatprep.subr.bf16.mxu0 0
    %92 = vmatpush1.bf16.msra.mxu0 0
    %93 = vmatprep.subr.bf16.mxu0 0
    %94 = vmatpush1.bf16.msra.mxu0 0
    %95 = vmatprep.subr.bf16.mxu0 0
    %96 = vmatpush1.bf16.msra.mxu0 0
    %97 = vmatprep.subr.bf16.mxu0 0
    %98 = vmatpush1.bf16.msra.mxu0 0
    %99 = vmatprep.mubr.bf16.mxu0 0
    %100 = vmatmul.mubr.bf16.gmra.mrb[0].mxu0 %v52
    %v101 = vpop.f32.mrb[0].mxu0
    %v102 = vadd.f32 0.0, %v101
    %v103 = vpop.f32.mrb[0].mxu0
    %v104 = vadd.f32 0.0, %v103
    %v105 = vpop.f32.mrb[0].mxu0
    %v106 = vadd.f32 0.0, %v105
    %v107 = vpop.f32.mrb[0].mxu0
    %v108 = vadd.f32 0.0, %v107
    %109 = vmatprep.mubr.bf16.mxu0 0
    %110 = vmatmul.mubr.bf16.gmra.mrb[0].mxu0 %v55
    %v111 = vpop.f32.mrb[0].mxu0
    %v112 = vadd.f32 0.0, %v111
    %v113 = vpop.f32.mrb[0].mxu0
    %v114 = vadd.f32 0.0, %v113
    %v115 = vpop.f32.mrb[0].mxu0
    %v116 = vadd.f32 0.0, %v115
    %v117 = vpop.f32.mrb[0].mxu0
    %v118 = vadd.f32 0.0, %v117
    %119 = vdwg.mxu0
    %120 = vmatprep.subr.bf16.mxu0 0
    %121 = vmatpush1.bf16.msra.mxu0 %v65
    %122 = vmatprep.subr.bf16.mxu0 0
    %123 = vmatpush1.bf16.msra.mxu0 0
    %124 = vmatprep.subr.bf16.mxu0 0
    %125 = vmatpush1.bf16.msra.mxu0 0
    %126 = vmatprep.subr.bf16.mxu0 0
    %127 = vmatpush1.bf16.msra.mxu0 0
    %128 = vmatprep.subr.bf16.mxu0 0
    %129 = vmatpush1.bf16.msra.mxu0 0
    %130 = vmatprep.subr.bf16.mxu0 0
    %131 = vmatpush1.bf16.msra.mxu0 0
    %132 = vmatprep.subr.bf16.mxu0 0
    %133 = vmatpush1.bf16.msra.mxu0 0
    %134 = vmatprep.subr.bf16.mxu0 0
    %135 = vmatpush1.bf16.msra.mxu0 0
    %136 = vmatprep.subr.bf16.mxu0 0
    %137 = vmatpush1.bf16.msra.mxu0 0
    %138 = vmatprep.subr.bf16.mxu0 0
    %139 = vmatpush1.bf16.msra.mxu0 0
    %140 = vmatprep.subr.bf16.mxu0 0
    %141 = vmatpush1.bf16.msra.mxu0 0
    %142 = vmatprep.subr.bf16.mxu0 0
    %143 = vmatpush1.bf16.msra.mxu0 0
    %144 = vmatprep.subr.bf16.mxu0 0
    %145 = vmatpush1.bf16.msra.mxu0 0
    %146 = vmatprep.subr.bf16.mxu0 0
    %147 = vmatpush1.bf16.msra.mxu0 0
    %148 = vmatprep.subr.bf16.mxu0 0
    %149 = vmatpush1.bf16.msra.mxu0 0
    %150 = vmatprep.subr.bf16.mxu0 0
    %151 = vmatpush1.bf16.msra.mxu0 0
    %152 = vmatprep.mubr.bf16.mxu0 0
    %153 = vmatmul.mubr.bf16.gmra.mrb[0].mxu0 %v52
    %v154 = vpop.f32.mrb[0].mxu0
    %v155 = vadd.f32 0.0, %v154
    %v156 = vpop.f32.mrb[0].mxu0
    %v157 = vpop.f32.mrb[0].mxu0
    %v158 = vadd.f32 0.0, %v157
    %v159 = vpop.f32.mrb[0].mxu0
    %160 = vmatprep.mubr.bf16.mxu0 0
    %161 = vmatmul.mubr.bf16.gmra.mrb[0].mxu0 %v55
    %v162 = vpop.f32.mrb[0].mxu0
    %v163 = vadd.f32 0.0, %v162
    %v164 = vpop.f32.mrb[0].mxu0
    %v165 = vpop.f32.mrb[0].mxu0
    %v166 = vadd.f32 0.0, %v165
    %v167 = vpop.f32.mrb[0].mxu0
    %168 = vdwg.mxu0
    %v169 = vmax.f32 %v102, 0.0
    %v170 = vmax.f32 %v104, 0.0
    %v171 = vmax.f32 %v155, 0.0
    %v172 = vmax.f32 %v106, 0.0
    %v173 = vmax.f32 %v108, 0.0
    %v174 = vmax.f32 %v158, 0.0
    %v175 = vmax.f32 %v112, 0.0
    %v176 = vmax.f32 %v114, 0.0
    %v177 = vmax.f32 %v163, 0.0
    %v178 = vmax.f32 %v116, 0.0
    %v179 = vmax.f32 %v118, 0.0
    %v180 = vmax.f32 %v166, 0.0
    %v181 = vpack.c.bf16 %v172, %v169
    %v182 = vpack.c.bf16 %v173, %v170
    %v183 = vpack.c.bf16 %v174, %v171
    %v184 = vpack.c.bf16 %v178, %v175
    %v185 = vpack.c.bf16 %v179, %v176
    %v186 = vpack.c.bf16 %v180, %v177
    %v187 = vld [vmem:[%s2] sm:$0xf]
    %v188 = vld [vmem:[%s2 + $0x4] sm:$0xf]
    %v189 = vld [vmem:[%s2 + $0x8] sm:$0xf]
    %v190 = vld [vmem:[%s2 + $0xc] sm:$0xf]
    %v191 = vld [vmem:[%s3] sm:$0xff]
    %v192 = vld [vmem:[%s3 + $0x8] sm:$0xff]
    %v193 = vld [vmem:[%s3 + $0x10] sm:$0xff]
    %v194 = vld [vmem:[%s3 + $0x18] sm:$0xff]
    %196 = vset.pattern.permute.xlu0 0
    %197 = vperm.xlu0 %196, %v191
    %v198 = vpop.permute.xlu0 %197
    %201 = vset.pattern.permute.xlu0 0
    %202 = vperm.xlu0 %201, %v192
    %v203 = vpop.permute.xlu0 %202
    %206 = vset.pattern.permute.xlu0 0
    %207 = vperm.xlu0 %206, %v193
    %v208 = vpop.permute.xlu0 %207
    %211 = vset.pattern.permute.xlu0 0
    %212 = vperm.xlu0 %211, %v194
    %v213 = vpop.permute.xlu0 %212
    %v219 = vunpack.c.l.b16 %v187
    %v220 = vunpack.c.l.b16 %v188
    %v221 = vunpack.c.l.b16 %v189
    %v222 = vunpack.c.l.b16 %v190
    %v223 = vpack.c.b16 %v220, %v219
    %v224 = vpack.c.b16 %v222, %v221
    %vm225 = vcmask 261120
    %v227 = vsel %vm225, %v223, 0
    %v230 = vsel %vm225, %v224, 0
    %232 = vmatprep.subr.bf16.mxu0 %v182
    %233 = vmatpush1.bf16.msra.mxu0 %v181
    %234 = vmatprep.subr.bf16.mxu0 %v185
    %235 = vmatpush1.bf16.msra.mxu0 %v184
    %236 = vmatprep.subr.bf16.mxu0 0
    %237 = vmatpush1.bf16.msra.mxu0 0
    %238 = vmatprep.subr.bf16.mxu0 0
    %239 = vmatpush1.bf16.msra.mxu0 0
    %240 = vmatprep.subr.bf16.mxu0 0
    %241 = vmatpush1.bf16.msra.mxu0 0
    %242 = vmatprep.subr.bf16.mxu0 0
    %243 = vmatpush1.bf16.msra.mxu0 0
    %244 = vmatprep.subr.bf16.mxu0 0
    %245 = vmatpush1.bf16.msra.mxu0 0
    %246 = vmatprep.subr.bf16.mxu0 0
    %247 = vmatpush1.bf16.msra.mxu0 0
    %248 = vmatprep.subr.bf16.mxu0 0
    %249 = vmatpush1.bf16.msra.mxu0 0
    %250 = vmatprep.subr.bf16.mxu0 0
    %251 = vmatpush1.bf16.msra.mxu0 0
    %252 = vmatprep.subr.bf16.mxu0 0
    %253 = vmatpush1.bf16.msra.mxu0 0
    %254 = vmatprep.subr.bf16.mxu0 0
    %255 = vmatpush1.bf16.msra.mxu0 0
    %256 = vmatprep.subr.bf16.mxu0 0
    %257 = vmatpush1.bf16.msra.mxu0 0
    %258 = vmatprep.subr.bf16.mxu0 0
    %259 = vmatpush1.bf16.msra.mxu0 0
    %260 = vmatprep.subr.bf16.mxu0 0
    %261 = vmatpush1.bf16.msra.mxu0 0
    %262 = vmatprep.subr.bf16.mxu0 0
    %263 = vmatpush1.bf16.msra.mxu0 0
    %264 = vmatprep.mubr.bf16.mxu0 0
    %265 = vmatmul.mubr.bf16.gmra.mrb[0].mxu0 %v227
    %v266 = vpop.f32.mrb[0].mxu0
    %v267 = vadd.f32 %v198, %v266
    %v268 = vpop.f32.mrb[0].mxu0
    %v269 = vadd.f32 %v198, %v268
    %v270 = vpop.f32.mrb[0].mxu0
    %v271 = vadd.f32 %v203, %v270
    %v272 = vpop.f32.mrb[0].mxu0
    %v273 = vadd.f32 %v203, %v272
    %274 = vmatprep.mubr.bf16.mxu0 0
    %275 = vmatmul.mubr.bf16.gmra.mrb[0].mxu0 %v230
    %v276 = vpop.f32.mrb[0].mxu0
    %v277 = vadd.f32 %v208, %v276
    %v278 = vpop.f32.mrb[0].mxu0
    %v279 = vadd.f32 %v208, %v278
    %v280 = vpop.f32.mrb[0].mxu0
    %v281 = vadd.f32 %v213, %v280
    %v282 = vpop.f32.mrb[0].mxu0
    %v283 = vadd.f32 %v213, %v282
    %284 = vdwg.mxu0
    %285 = vmatprep.subr.bf16.mxu0 0
    %286 = vmatpush1.bf16.msra.mxu0 %v183
    %287 = vmatprep.subr.bf16.mxu0 0
    %288 = vmatpush1.bf16.msra.mxu0 %v186
    %289 = vmatprep.subr.bf16.mxu0 0
    %290 = vmatpush1.bf16.msra.mxu0 0
    %291 = vmatprep.subr.bf16.mxu0 0
    %292 = vmatpush1.bf16.msra.mxu0 0
    %293 = vmatprep.subr.bf16.mxu0 0
    %294 = vmatpush1.bf16.msra.mxu0 0
    %295 = vmatprep.subr.bf16.mxu0 0
    %296 = vmatpush1.bf16.msra.mxu0 0
    %297 = vmatprep.subr.bf16.mxu0 0
    %298 = vmatpush1.bf16.msra.mxu0 0
    %299 = vmatprep.subr.bf16.mxu0 0
    %300 = vmatpush1.bf16.msra.mxu0 0
    %301 = vmatprep.subr.bf16.mxu0 0
    %302 = vmatpush1.bf16.msra.mxu0 0
    %303 = vmatprep.subr.bf16.mxu0 0
    %304 = vmatpush1.bf16.msra.mxu0 0
    %305 = vmatprep.subr.bf16.mxu0 0
    %306 = vmatpush1.bf16.msra.mxu0 0
    %307 = vmatprep.subr.bf16.mxu0 0
    %308 = vmatpush1.bf16.msra.mxu0 0
    %309 = vmatprep.subr.bf16.mxu0 0
    %310 = vmatpush1.bf16.msra.mxu0 0
    %311 = vmatprep.subr.bf16.mxu0 0
    %312 = vmatpush1.bf16.msra.mxu0 0
    %313 = vmatprep.subr.bf16.mxu0 0
    %314 = vmatpush1.bf16.msra.mxu0 0
    %315 = vmatprep.subr.bf16.mxu0 0
    %316 = vmatpush1.bf16.msra.mxu0 0
    %317 = vmatprep.mubr.bf16.mxu0 0
    %318 = vmatmul.mubr.bf16.gmra.mrb[0].mxu0 %v227
    %v319 = vpop.f32.mrb[0].mxu0
    %v320 = vadd.f32 %v198, %v319
    %v321 = vpop.f32.mrb[0].mxu0
    %v322 = vpop.f32.mrb[0].mxu0
    %v323 = vadd.f32 %v203, %v322
    %v324 = vpop.f32.mrb[0].mxu0
    %325 = vmatprep.mubr.bf16.mxu0 0
    %326 = vmatmul.mubr.bf16.gmra.mrb[0].mxu0 %v230
    %v327 = vpop.f32.mrb[0].mxu0
    %v328 = vadd.f32 %v208, %v327
    %v329 = vpop.f32.mrb[0].mxu0
    %v330 = vpop.f32.mrb[0].mxu0
    %v331 = vadd.f32 %v213, %v330
    %v332 = vpop.f32.mrb[0].mxu0
    %333 = vdwg.mxu0
    %v334 = vmax.f32 %v267, 0.0
    %v335 = vmax.f32 %v269, 0.0
    %v336 = vmax.f32 %v320, 0.0
    %v337 = vmax.f32 %v271, 0.0
    %v338 = vmax.f32 %v273, 0.0
    %v339 = vmax.f32 %v323, 0.0
    %v340 = vmax.f32 %v277, 0.0
    %v341 = vmax.f32 %v279, 0.0
    %v342 = vmax.f32 %v328, 0.0
    %v343 = vmax.f32 %v281, 0.0
    %v344 = vmax.f32 %v283, 0.0
    %v345 = vmax.f32 %v331, 0.0
    %v346 = vld [vmem:[%s4] sm:$0xff]
    %v347 = vld [vmem:[%s4 + $0x8] sm:$0xff]
    %v348 = vld [vmem:[%s4 + $0x10] sm:$0xff]
    %v349 = vld [vmem:[%s4 + $0x18] sm:$0xff]
    %351 = vset.pattern.permute.xlu0 0
    %352 = vperm.xlu0 %351, %v346
    %v353 = vpop.permute.xlu0 %352
    %356 = vset.pattern.permute.xlu0 0
    %357 = vperm.xlu0 %356, %v347
    %v358 = vpop.permute.xlu0 %357
    %361 = vset.pattern.permute.xlu0 0
    %362 = vperm.xlu0 %361, %v348
    %v363 = vpop.permute.xlu0 %362
    %366 = vset.pattern.permute.xlu0 0
    %367 = vperm.xlu0 %366, %v349
    %v368 = vpop.permute.xlu0 %367
    %v370 = vmul.f32 %v334, %v353
    %v371 = vmul.f32 %v335, %v353
    %v372 = vmul.f32 %v336, %v353
    %v373 = vmul.f32 %v337, %v358
    %v374 = vmul.f32 %v338, %v358
    %v375 = vmul.f32 %v339, %v358
    %v376 = vmul.f32 %v340, %v363
    %v377 = vmul.f32 %v341, %v363
    %v378 = vmul.f32 %v342, %v363
    %v379 = vmul.f32 %v343, %v368
    %v380 = vmul.f32 %v344, %v368
    %v381 = vmul.f32 %v345, %v368
    %v382 = vadd.f32 %v370, %v373
    %v383 = vadd.f32 %v382, %v376
    %v384 = vadd.f32 %v383, %v379
    %v385 = vrot.slane %v384, 4
    %v386 = vadd.f32 %v384, %v385
    %v387 = vrot.slane %v386, 2
    %v388 = vadd.f32 %v386, %v387
    %v389 = vrot.slane %v388, 1
    %v390 = vadd.f32 %v388, %v389
    %v391 = vadd.f32 %v371, %v374
    %v392 = vadd.f32 %v391, %v377
    %v393 = vadd.f32 %v392, %v380
    %v394 = vrot.slane %v393, 4
    %v395 = vadd.f32 %v393, %v394
    %v396 = vrot.slane %v395, 2
    %v397 = vadd.f32 %v395, %v396
    %v398 = vrot.slane %v397, 1
    %v399 = vadd.f32 %v397, %v398
    %v400 = vadd.f32 %v372, %v375
    %v401 = vadd.f32 %v400, %v378
    %v402 = vadd.f32 %v401, %v381
    %v403 = vrot.slane %v402, 4
    %v404 = vadd.f32 %v402, %v403
    %v405 = vrot.slane %v404, 2
    %v406 = vadd.f32 %v404, %v405
    %v407 = vrot.slane %v406, 1
    %v408 = vadd.f32 %v406, %v407
    %s409 = sld [smem:[#allocation2]]
    %v410 = vstv %s409
    %v411 = vadd.f32 %v390, %v410
    %v412 = vadd.f32 %v399, %v410
    %v413 = vadd.f32 %v408, %v410
    %v414 = vmul.f32 %v411, 0.5
    %v415 = vmul.f32 %v412, 0.5
    %v416 = vmul.f32 %v413, 0.5
    %v417 = vtanh.pop %v414
    %v418 = vtanh.pop %v415
    %v419 = vtanh.pop %v416
    %v420 = vmul.f32 %v417, 0.5
    %v421 = vmul.f32 %v418, 0.5
    %v422 = vmul.f32 %v419, 0.5
    %v423 = vadd.f32 %v420, 0.5
    %v424 = vadd.f32 %v421, 0.5
    %v425 = vadd.f32 %v422, 0.5
    %v429 = vcombine.low %v423, %v424
    %v431 = vunpack.c.l.s4 1966171168
    %v432 = vunpack.c.0.s8 %v431
    %v433 = vlaneseq
    %v434 = vshrl.u32 %v433, 7
    %v435 = vsub.s32 %v432, %v434
    %v436 = vrot.slane %v429, %v435
    %v438 = vunpack.c.l.s4 1966171168
    %v439 = vunpack.c.0.s8 %v438
    %v440 = vlaneseq
    %v441 = vshrl.u32 %v440, 7
    %v442 = vsub.s32 %v439, %v441
    %v443 = vrot.slane %v425, %v442
    %v444 = vcombine.low %v436, %v443
    %v446 = vunpack.c.l.s4 1966171168
    %v447 = vunpack.c.0.s8 %v446
    %v448 = vlaneseq
    %v449 = vshrl.u32 %v448, 7
    %v450 = vsub.s32 %v447, %v449
    %v451 = vrot.slane %v444, %v450
    %v453 = vlaneseq
    %vm454 = vcmp.ge.s32.totalorder %v453, 0
    %vm455 = vcmp.lt.s32.totalorder %v453, 384
    %vm456 = vmand %vm454, %vm455
    %457 = vst.msk [vmem:[#allocation3] sm:$0x7] %vm456, %v451
    // Predicated region
    $region26: #{tpu_custom_call.1} parent=1 // pred_check
      _
    $region27: #{tpu_custom_call.1} parent=1 // pred_check_branch
      %459 = sbr.rel (0) target = $region29
    $region28: #{tpu_custom_call.1} parent=1 // pred_region
      %s461 = ssub.s32 48, 48
      %462 = vsyncadd [#allocation4], %s461
      %s464 = sshll.u32 [#allocation3], 4
      %s465 = int_to_ptr.vmem [resolvable:$true] %s464
      %467 = dma.vmem_to_hbm [thread:$0]  %s465, 48, %s6, [#allocation4]
    $region29: #{tpu_custom_call.1} parent=1 // pred_fallthru
      _
    // Predicated region
    $region30: #{tpu_custom_call.1} parent=1 // pred_check
      _
    $region31: #{tpu_custom_call.1} parent=1 // pred_check_branch
      %469 = sbr.rel (0) target = $region33
    $region32: #{tpu_custom_call.1} parent=1 // pred_region
      %470 = dma.done [#allocation4], 48
    $region33: #{tpu_custom_call.1} parent=1 // pred_fallthru
      _
    %471 = vsyncpa [#allocation4], 1

</llo_original>
